<compile_context>
chip_gen: v7x
topology: tpu7x:2x2x1
jax: 0.10.0
libtpu: 0.0.40
codegen_flags: <defaults>
</compile_context>

<pallas_src>
from functools import partial

import numpy as np
import jax
import jax.numpy as jnp
from jax import lax
from jax.experimental import pallas as pl
from jax.experimental.pallas import tpu as pltpu

output_stride_ref = {'32': 3, '16': 2, '8': 1}

_BN_EPS = 1e-5
_VMEM_LIMIT = 32 * 1024 * 1024          # scoped-VMEM budget safe on v5e/v6e/v7x
_TM_BIG = 256                            # M tile when M > 512
_TK = 2048                               # K tile for the K-tiled fallback kernel
_RESIDENT_MAX_BYTES = 5 * 1024 * 1024    # bf16 weight bytes kept fully VMEM-resident


def _round_up(v, m):
    return (v + m - 1) // m * m


# ----------------------------------------------------------------------------
# Pallas kernels
# ----------------------------------------------------------------------------
def _resident_kernel(relu, has_add):
    """Matmul with VMEM-resident weight; epilogue = scale/shift (+add) (+relu)."""
    if has_add:
        def kernel(a_ref, b_ref, sc_ref, sh_ref, ad_ref, o_ref):
            acc = jnp.dot(a_ref[...], b_ref[...], preferred_element_type=jnp.float32)
            y = acc * sc_ref[...] + sh_ref[...] + ad_ref[...].astype(jnp.float32)
            if relu:
                y = jnp.maximum(y, 0.0)
            o_ref[...] = y.astype(o_ref.dtype)
    else:
        def kernel(a_ref, b_ref, sc_ref, sh_ref, o_ref):
            acc = jnp.dot(a_ref[...], b_ref[...], preferred_element_type=jnp.float32)
            y = acc * sc_ref[...] + sh_ref[...]
            if relu:
                y = jnp.maximum(y, 0.0)
            o_ref[...] = y.astype(o_ref.dtype)
    return kernel


def _ktiled_kernel(relu, has_add):
    """K-tiled matmul with f32 accumulator scratch; epilogue on the last K step."""
    if has_add:
        def kernel(a_ref, b_ref, sc_ref, sh_ref, ad_ref, o_ref, acc_ref):
            @pl.when(pl.program_id(1) == 0)
            def _init():
                acc_ref[...] = jnp.zeros_like(acc_ref)

            acc_ref[...] += jnp.dot(a_ref[...], b_ref[...],
                                    preferred_element_type=jnp.float32)

            @pl.when(pl.program_id(1) == pl.num_programs(1) - 1)
            def _finish():
                y = acc_ref[...] * sc_ref[...] + sh_ref[...] + ad_ref[...].astype(jnp.float32)
                if relu:
                    y = jnp.maximum(y, 0.0)
                o_ref[...] = y.astype(o_ref.dtype)
    else:
        def kernel(a_ref, b_ref, sc_ref, sh_ref, o_ref, acc_ref):
            @pl.when(pl.program_id(1) == 0)
            def _init():
                acc_ref[...] = jnp.zeros_like(acc_ref)

            acc_ref[...] += jnp.dot(a_ref[...], b_ref[...],
                                    preferred_element_type=jnp.float32)

            @pl.when(pl.program_id(1) == pl.num_programs(1) - 1)
            def _finish():
                y = acc_ref[...] * sc_ref[...] + sh_ref[...]
                if relu:
                    y = jnp.maximum(y, 0.0)
                o_ref[...] = y.astype(o_ref.dtype)
    return kernel


def _bnrelu_kernel(x_ref, sc_ref, sh_ref, o_ref):
    y = x_ref[...].astype(jnp.float32) * sc_ref[...] + sh_ref[...]
    o_ref[...] = jnp.maximum(y, 0.0).astype(o_ref.dtype)


def _mm_resident(a, b, scale, shift, add, relu, TM, Mp, K, N, out_dtype, has_add):
    grid = (Mp // TM,)
    in_specs = [pl.BlockSpec((TM, K), lambda i: (i, 0)),
                pl.BlockSpec((K, N), lambda i: (0, 0)),      # weight: loaded once
                pl.BlockSpec((1, N), lambda i: (0, 0)),
                pl.BlockSpec((1, N), lambda i: (0, 0))]
    args = [a, b, scale, shift]
    if has_add:
        in_specs.append(pl.BlockSpec((TM, N), lambda i: (i, 0)))
        args.append(add)
    return pl.pallas_call(
        _resident_kernel(relu, has_add),
        out_shape=jax.ShapeDtypeStruct((Mp, N), out_dtype),
        grid_spec=pltpu.PrefetchScalarGridSpec(
            num_scalar_prefetch=0,
            grid=grid,
            in_specs=in_specs,
            out_specs=pl.BlockSpec((TM, N), lambda i: (i, 0))),
        compiler_params=pltpu.CompilerParams(
            dimension_semantics=("parallel",),
            vmem_limit_bytes=_VMEM_LIMIT),
    )(*args)


def _mm_ktiled(a, b, scale, shift, add, relu, TM, Mp, K, N, out_dtype, has_add):
    Kp = _round_up(K, _TK)
    if Kp != K:
        a = jnp.pad(a, ((0, 0), (0, Kp - K)))
        b = jnp.pad(b, ((0, Kp - K), (0, 0)))
    grid = (Mp // TM, Kp // _TK)
    in_specs = [pl.BlockSpec((TM, _TK), lambda i, k: (i, k)),
                pl.BlockSpec((_TK, N), lambda i, k: (k, 0)),
                pl.BlockSpec((1, N), lambda i, k: (0, 0)),
                pl.BlockSpec((1, N), lambda i, k: (0, 0))]
    args = [a, b, scale, shift]
    if has_add:
        in_specs.append(pl.BlockSpec((TM, N), lambda i, k: (i, 0)))
        args.append(add)
    return pl.pallas_call(
        _ktiled_kernel(relu, has_add),
        out_shape=jax.ShapeDtypeStruct((Mp, N), out_dtype),
        grid_spec=pltpu.PrefetchScalarGridSpec(
            num_scalar_prefetch=0,
            grid=grid,
            in_specs=in_specs,
            out_specs=pl.BlockSpec((TM, N), lambda i, k: (i, 0)),
            scratch_shapes=[pltpu.VMEM((TM, N), jnp.float32)]),
        compiler_params=pltpu.CompilerParams(
            dimension_semantics=("parallel", "arbitrary"),
            vmem_limit_bytes=_VMEM_LIMIT),
    )(*args)


def _mm_fused(a, b, scale, shift, add, relu, out_dtype=jnp.bfloat16):
    """y = maybe_relu((a @ b) * scale + shift [+ add]) with f32 accumulation."""
    M, K = a.shape
    N = b.shape[1]
    # Tiny problems: padding to MXU tiles would waste nearly all work -> plain XLA.
    if M < 8 or N < 32:
        y = jnp.dot(a.astype(jnp.float32), b.astype(jnp.float32),
                    preferred_element_type=jnp.float32) * scale + shift
        if add is not None:
            y = y + add.astype(jnp.float32)
        if relu:
            y = jnp.maximum(y, 0.0)
        return y.astype(out_dtype)

    a = a.astype(jnp.bfloat16)
    b = b.astype(jnp.bfloat16)
    scale = scale.astype(jnp.float32).reshape(1, N)
    shift = shift.astype(jnp.float32).reshape(1, N)

    if M <= 512:
        TM = _round_up(M, 8)
        Mp = TM
    else:
        TM = _TM_BIG
        Mp = _round_up(M, TM)
    if Mp != M:
        a = jnp.pad(a, ((0, Mp - M), (0, 0)))
        if add is not None:
            add = jnp.pad(add, ((0, Mp - M), (0, 0)))
    if add is not None:
        add = add.astype(jnp.bfloat16)

    has_add = add is not None
    if K * N * 2 <= _RESIDENT_MAX_BYTES:
        out = _mm_resident(a, b, scale, shift, add, relu, TM, Mp, K, N, out_dtype, has_add)
    else:
        out = _mm_ktiled(a, b, scale, shift, add, relu, TM, Mp, K, N, out_dtype, has_add)
    return out[:M] if Mp != M else out


# ----------------------------------------------------------------------------
# Layer helpers (jit-wrapped glue around the Pallas kernels)
# ----------------------------------------------------------------------------
def _affine_from(bias, bn):
    """Fold bias (+ optional eval-mode BatchNorm) into a per-channel scale/shift."""
    if bn is None:
        return jnp.ones_like(bias), bias
    s = bn['gamma'] * lax.rsqrt(bn['rv'] + _BN_EPS)
    t = bn['beta'] - bn['rm'] * s
    return s, bias * s + t


@partial(jax.jit, static_argnames=('stride', 'padding', 'dilation', 'relu'))
def _conv2d_impl(x, w, bias, bn, add, *, stride, padding, dilation, relu):
    if padding:
        x = jnp.pad(x, ((0, 0), (padding, padding), (padding, padding), (0, 0)))
    n, hp, wp, c = x.shape
    kh, kw, _, cout = w.shape
    oh = (hp - dilation * (kh - 1) - 1) // stride + 1
    ow = (wp - dilation * (kw - 1) - 1) // stride + 1
    xb = x.astype(jnp.bfloat16)
    cols = []
    for i in range(kh):
        for j in range(kw):
            cols.append(xb[:,
                           i * dilation: i * dilation + stride * (oh - 1) + 1: stride,
                           j * dilation: j * dilation + stride * (ow - 1) + 1: stride,
                           :])
    patches = cols[0] if len(cols) == 1 else jnp.concatenate(cols, axis=-1)
    a = patches.reshape(n * oh * ow, kh * kw * c)
    wm = w.reshape(kh * kw * c, cout)
    scale, shift = _affine_from(bias, bn)
    add2 = None if add is None else add.reshape(n * oh * ow, cout)
    y = _mm_fused(a, wm, scale, shift, add2, relu)
    return y.reshape(n, oh, ow, cout)


def conv2d(x, p, stride=1, padding=0, dilation=1, bn=None, relu=False, add=None):
    """Conv2d + bias [+ fused following BN+ReLU] [+ fused residual add]."""
    return _conv2d_impl(x, p['w'], p['b'], bn, add,
                        stride=stride, padding=padding, dilation=dilation, relu=relu)


@partial(jax.jit, static_argnames=('output_padding', 'relu'))
def _deconv_s2_impl(x, w_eq, bias, bn, *, output_padding, relu):
    """ConvTranspose2d(k=3, stride=2, padding=1, output_padding) via sub-pixel conv."""
    n, h, w, c = x.shape
    cout4 = w_eq.shape[-1]
    cout = cout4 // 4
    xp = jnp.pad(x, ((0, 0), (0, 1), (0, 1), (0, 0))).astype(jnp.bfloat16)
    cols = []
    for dh in range(2):
        for dw in range(2):
            cols.append(xp[:, dh:dh + h, dw:dw + w, :])
    a = jnp.concatenate(cols, axis=-1).reshape(n * h * w, 4 * c)
    wm = w_eq.reshape(4 * c, cout4)
    scale, shift = _affine_from(bias, bn)
    scale4 = jnp.tile(scale, 4)
    shift4 = jnp.tile(shift, 4)
    y = _mm_fused(a, wm, scale4, shift4, None, relu)          # (n*h*w, 4*cout)
    y = y.reshape(n, h, w, 2, 2, cout)
    y = jnp.transpose(y, (0, 1, 3, 2, 4, 5)).reshape(n, 2 * h, 2 * w, cout)
    ho = 2 * h - 1 + output_padding
    wo = 2 * w - 1 + output_padding
    return y[:, :ho, :wo, :]


def deconv_subpixel(x, p, output_padding, bn=None, relu=False):
    return _deconv_s2_impl(x, p['w_eq'], p['b'], bn,
                           output_padding=output_padding, relu=relu)


@jax.jit
def _bn_relu_impl(x2d, bn):
    M, C = x2d.shape
    s = bn['gamma'] * lax.rsqrt(bn['rv'] + _BN_EPS)
    t = bn['beta'] - bn['rm'] * s
    if C % 128 != 0 or M < 8:
        # Narrow-channel / tiny cases: Pallas lane padding would waste bandwidth.
        y = jnp.maximum(x2d.astype(jnp.float32) * s + t, 0.0)
        return y.astype(x2d.dtype)
    s2 = s.reshape(1, C).astype(jnp.float32)
    t2 = t.reshape(1, C).astype(jnp.float32)
    Mp = _round_up(M, 8)
    if Mp <= 1024:
        TR = Mp
    else:
        TR = 512
        Mp = _round_up(M, TR)
    xp = x2d if Mp == M else jnp.pad(x2d, ((0, Mp - M), (0, 0)))
    out = pl.pallas_call(
        _bnrelu_kernel,
        out_shape=jax.ShapeDtypeStruct((Mp, C), x2d.dtype),
        grid_spec=pltpu.PrefetchScalarGridSpec(
            num_scalar_prefetch=0,
            grid=(Mp // TR,),
            in_specs=[pl.BlockSpec((TR, C), lambda i: (i, 0)),
                      pl.BlockSpec((1, C), lambda i: (0, 0)),
                      pl.BlockSpec((1, C), lambda i: (0, 0))],
            out_specs=pl.BlockSpec((TR, C), lambda i: (i, 0))),
        compiler_params=pltpu.CompilerParams(
            dimension_semantics=("parallel",),
            vmem_limit_bytes=_VMEM_LIMIT),
    )(xp, s2, t2)
    return out[:M] if Mp != M else out


def bn_relu(x, bn):
    """Standalone eval-mode BatchNorm2d + ReLU (used where the input is re-used raw)."""
    n, h, w, c = x.shape
    y = _bn_relu_impl(x.reshape(n * h * w, c), bn)
    return y.reshape(n, h, w, c)


def avg_pool2d(x, k):
    n, h, w, c = x.shape
    oh, ow = h // k, w // k
    xr = x[:, :oh * k, :ow * k, :].reshape(n, oh, k, ow, k, c).astype(jnp.float32)
    return xr.mean(axis=(2, 4)).astype(x.dtype)


def upsample_bilinear_align(x, out_h, out_w):
    """Bilinear upsample with align_corners=True (plain JAX gather/interp)."""
    n, h, w, c = x.shape

    def coords(out_s, in_s):
        if out_s == 1 or in_s == 1:
            return jnp.zeros((out_s,), jnp.float32)
        return jnp.arange(out_s, dtype=jnp.float32) * ((in_s - 1) / (out_s - 1))

    sh = coords(out_h, h)
    sw = coords(out_w, w)
    h0 = jnp.floor(sh).astype(jnp.int32)
    h1 = jnp.minimum(h0 + 1, h - 1)
    fh = (sh - h0).astype(jnp.float32)
    w0 = jnp.floor(sw).astype(jnp.int32)
    w1 = jnp.minimum(w0 + 1, w - 1)
    fw = (sw - w0).astype(jnp.float32)
    top = (x[:, h0, :, :] * (1.0 - fh)[None, :, None, None]
           + x[:, h1, :, :] * fh[None, :, None, None])
    out = (top[:, :, w0, :] * (1.0 - fw)[None, None, :, None]
           + top[:, :, w1, :] * fw[None, None, :, None])
    return out


# ----------------------------------------------------------------------------
# Deterministic parameter construction (mirrors the PyTorch __init__)
# ----------------------------------------------------------------------------
class ParamGen:
    def __init__(self, seed=0):
        self.key = jax.random.PRNGKey(seed)
        self.i = 0

    def normal(self, shape, fan_in):
        self.i += 1
        k = jax.random.fold_in(self.key, self.i)
        return jax.random.normal(k, shape, jnp.float32) * np.sqrt(2.0 / fan_in)


def make_conv(pg, cin, cout, k):
    w = pg.normal((k, k, cin, cout), fan_in=k * k * cin)
    return {'w': w.astype(jnp.bfloat16), 'b': jnp.zeros((cout,), jnp.float32)}


def make_bn(c):
    return {'gamma': jnp.ones((c,), jnp.float32),
            'beta': jnp.zeros((c,), jnp.float32),
            'rm': jnp.zeros((c,), jnp.float32),
            'rv': jnp.ones((c,), jnp.float32)}


def _subpixel_weight(w):
    """(cin, cout, 3, 3) ConvTranspose2d(k3,s2,p1) weight -> (2,2,cin,4*cout) sub-pixel weight."""
    cin, cout = w.shape[0], w.shape[1]
    kmap = ((1, None), (2, 0))    # kmap[parity][tap] -> kernel index (or None)
    w_eq = jnp.zeros((2, 2, cin, 4 * cout), w.dtype)
    for ph in range(2):
        for pw_ in range(2):
            p_idx = ph * 2 + pw_
            for dh in range(2):
                kh = kmap[ph][dh]
                if kh is None:
                    continue
                for dw in range(2):
                    kw = kmap[pw_][dw]
                    if kw is None:
                        continue
                    w_eq = w_eq.at[dh, dw, :, p_idx * cout:(p_idx + 1) * cout].set(
                        w[:, :, kh, kw])
    return w_eq


def make_residual(pg, cin, cout, stride):
    p = {'bn': make_bn(cin),
         'conv1': make_conv(pg, cin, cout, 3),
         'bn_mid': make_bn(cout),
         'conv2': make_conv(pg, cout, cout, 3),
         'stride': stride}
    if stride > 1:
        p['shortcut'] = make_conv(pg, cin, cout, 1)
    return p


def make_unetconv(pg, cin, cout, mod_in_planes, is_input_bn, dilation):
    p = {'mod': bool(mod_in_planes), 'dilation': int(dilation)}
    if p['mod']:
        if is_input_bn:
            p['bn0'] = make_bn(cin)
        p['conv0'] = make_conv(pg, cin, cout, 1)
        cin = cout
    p['bn1'] = make_bn(cin)
    p['conv1'] = make_conv(pg, cin, cout, 3)
    p['bn2'] = make_bn(cout)
    p['conv2'] = make_conv(pg, cout, cout, 3)
    return p


def make_unetdeconv(pg, cin, cout, mod_in_planes, max_planes, dilation, out_pad):
    p = {'mod': bool(mod_in_planes), 'dilation': int(dilation), 'op': int(out_pad)}
    p['bn0'] = make_bn(cin)
    w = pg.normal((cin, cout, 3, 3), fan_in=9 * cin)   # PyTorch ConvTranspose2d layout
    if dilation > 1:
        # stride-1 dilated transposed conv == correlation with flipped kernel.
        w_hwio = jnp.transpose(jnp.flip(w, axis=(2, 3)), (2, 3, 0, 1))
        p['deconv0'] = {'w': w_hwio.astype(jnp.bfloat16),
                        'b': jnp.zeros((cout,), jnp.float32)}
    else:
        p['deconv0'] = {'w_eq': _subpixel_weight(w).astype(jnp.bfloat16),
                        'b': jnp.zeros((cout,), jnp.float32)}
    p['bn1'] = make_bn(cout)
    p['deconv1'] = make_conv(pg, cout, cout, 3)        # plain Conv2d in the reference
    if p['mod']:
        p['bn2'] = make_bn(cout)
        p['conv2'] = make_conv(pg, cout, max_planes, 1)
    return p


def make_unet_module(pg, in_planes, nblocks, filter_size, in_dim, index, max_planes, atrous):
    p = {'down': [], 'up': []}
    cur_dim = float(in_dim)
    if in_planes != max_planes:
        p['bn'] = make_bn(in_planes)
        p['upsample'] = make_conv(pg, in_planes, max_planes, 1)
    for i in range(nblocks):
        in_ = in_planes if i == 0 else filter_size
        p['down'].append(make_unetconv(pg, in_, filter_size,
                                       bool(index and i == 0),
                                       in_planes == max_planes,
                                       2 ** i * atrous))
        out_ = filter_size if i == nblocks - 1 else 2 * filter_size
        this_op = 1 - int(cur_dim % 2)
        p['up'].append(make_unetdeconv(pg, out_, filter_size,
                                       bool(index and i == 0),
                                       max_planes, 2 ** i * atrous, this_op))
        cur_dim = cur_dim // 2
    return p


def make_features(pg, in_dim, start_planes=64, filters_base=64, depth=4, output_stride='16'):
    filter_factors = [1, 1, 1, 1]
    feature_map_sizes = [filters_base * s for s in filter_factors]
    if filters_base == 64 and depth == 4:
        output_features = [256, 512, 768, 1024]
    elif filters_base == 128 and depth == 4:
        output_features = [512, 1024, 1536, 2048]
    elif filters_base == 128 and depth == 7:
        output_features = [512, 1280, 2048, 2304]
    else:
        raise ValueError("unsupported (filters_base, depth) combination")

    num_planes = start_planes
    p = {'conv1': make_conv(pg, 3, num_planes, 7),
         'residual1': make_residual(pg, num_planes, num_planes * 2, stride=2),
         'steps': []}
    in_dim = in_dim // 4
    num_planes = num_planes * 2
    block_depth = [2, depth, depth, 1]
    nblocks = 2
    for i, d in enumerate(block_depth):
        if i == len(block_depth) - 1:
            nblocks = 1
        for _ in range(d):
            blk = make_unet_module(pg, num_planes, nblocks, feature_map_sizes[i],
                                   in_dim, 1, output_features[i],
                                   (i - output_stride_ref[output_stride]) * 2)
            p['steps'].append(('unet', blk))
            num_planes = output_features[i]
        if i != len(block_depth) - 1:
            if i > output_stride_ref[output_stride] - 1:
                p['steps'].append(('pool1', None))      # AvgPool2d(1,1) == identity
            else:
                p['steps'].append(('pool2', None))      # AvgPool2d(2,2)
                in_dim = in_dim // 2
    p['bn2'] = make_bn(num_planes)
    return p


def make_dilated_sunet64(pg, in_dim, num_classes=21, output_stride='16'):
    feats = make_features(pg, in_dim, start_planes=64, filters_base=64,
                          depth=4, output_stride=output_stride)
    final = {'conv0': make_conv(pg, 1024, 512, 3),
             'bn1': make_bn(512),
             'conv3': make_conv(pg, 512, 512, 3),
             'bn4': make_bn(512),
             'conv6': make_conv(pg, 512, num_classes, 1)}
    return {'features': feats, 'final': final}


# ----------------------------------------------------------------------------
# Forward passes (BN+ReLU fused into the producing matmul wherever the raw
# conv output is consumed only by that BN; otherwise standalone bn_relu).
# ----------------------------------------------------------------------------
def residual_fwd_pre(x_act, p):
    """ResidualBlock where the leading BN+ReLU has already been fused upstream."""
    if 'shortcut' in p:
        residual = conv2d(x_act, p['shortcut'], stride=p['stride'])
    else:
        residual = x_act
    out = conv2d(x_act, p['conv1'], stride=p['stride'], padding=1,
                 bn=p['bn_mid'], relu=True)
    out = conv2d(out, p['conv2'], stride=1, padding=1, add=residual)
    return out


def unetconv_fwd(x, p, out_bn=None, out_relu=False):
    d = p['dilation']
    if p['mod']:
        if 'bn0' in p:
            x = bn_relu(x, p['bn0'])
        x = conv2d(x, p['conv0'], bn=p['bn1'], relu=True)        # 1x1 + fused bn1
    else:
        x = bn_relu(x, p['bn1'])
    if d > 1:
        x = conv2d(x, p['conv1'], padding=d, dilation=d, bn=p['bn2'], relu=True)
        x = conv2d(x, p['conv2'], padding=2 * d, dilation=2 * d,
                   bn=out_bn, relu=out_relu)
    else:
        x = conv2d(x, p['conv1'], stride=2, padding=1, bn=p['bn2'], relu=True)
        x = conv2d(x, p['conv2'], padding=1, bn=out_bn, relu=out_relu)
    return x


def unetdeconv_fwd(x, p, skip_bn0=False, add=None):
    d = p['dilation']
    if not skip_bn0:
        x = bn_relu(x, p['bn0'])
    if d > 1:
        x = conv2d(x, p['deconv0'], padding=2 * d, dilation=2 * d,
                   bn=p['bn1'], relu=True)
    else:
        x = deconv_subpixel(x, p['deconv0'], output_padding=p['op'],
                            bn=p['bn1'], relu=True)
    if p['mod']:
        if d > 1:
            x = conv2d(x, p['deconv1'], padding=d, dilation=d, bn=p['bn2'], relu=True)
        else:
            x = conv2d(x, p['deconv1'], padding=1, bn=p['bn2'], relu=True)
        x = conv2d(x, p['conv2'], add=add)                       # 1x1 + fused skip add
    else:
        if d > 1:
            x = conv2d(x, p['deconv1'], padding=d, dilation=d, add=add)
        else:
            x = conv2d(x, p['deconv1'], padding=1, add=add)
    return x


def unet_module_fwd(x, p):
    xs = []
    if 'upsample' in p:
        x = bn_relu(x, p['bn'])
    xs.append(x)
    nb = len(p['down'])
    for i, dp in enumerate(p['down']):
        last = (i == nb - 1)
        # The last down block's output feeds only up[nb-1].bn0 -> fuse that BN+ReLU.
        out_bn = p['up'][nb - 1]['bn0'] if last else None
        xs.append(unetconv_fwd(xs[-1], dp, out_bn=out_bn, out_relu=last))
    out = xs[-1]
    for i in reversed(range(nb)):
        if i == 0:
            skip = xs[0]
            if 'upsample' in p:
                skip = conv2d(skip, p['upsample'])
            out = unetdeconv_fwd(out, p['up'][i], skip_bn0=(i == nb - 1), add=skip)
        else:
            out = unetdeconv_fwd(out, p['up'][i], skip_bn0=(i == nb - 1))
            out = jnp.concatenate([out, xs[i]], axis=-1)         # channel concat (NHWC)
    return out


def dilated_sunet64_forward(x_nchw, p):
    """Full Dilated_sunet64 forward.  Input NCHW, output NCHW logits."""
    n, _, h_in, w_in = x_nchw.shape
    x = jnp.transpose(x_nchw, (0, 2, 3, 1)).astype(jnp.bfloat16)   # -> NHWC
    f = p['features']
    # conv1 with residual1's leading BN+ReLU fused into its epilogue.
    out = conv2d(x, f['conv1'], stride=2, padding=3,
                 bn=f['residual1']['bn'], relu=True)
    out = residual_fwd_pre(out, f['residual1'])
    for kind, bp in f['steps']:
        if kind == 'unet':
            out = unet_module_fwd(out, bp)
        elif kind == 'pool2':
            out = avg_pool2d(out, 2)
        # 'pool1' is identity
    out = bn_relu(out, f['bn2'])                    # features.bn2 followed by F.relu
    fin = p['final']
    out = conv2d(out, fin['conv0'], padding=2, dilation=2, bn=fin['bn1'], relu=True)
    out = conv2d(out, fin['conv3'], padding=1, bn=fin['bn4'], relu=True)
    out = conv2d(out, fin['conv6'])                 # 1x1 -> num_classes (plain-XLA path)
    out = upsample_bilinear_align(out.astype(jnp.float32), h_in, w_in)
    return jnp.transpose(out, (0, 3, 1, 2))         # -> NCHW


# ----------------------------------------------------------------------------
if __name__ == "__main__":
    # Small input consistent with the module: the architecture is fixed by
    # kind='64' (start_planes=64, filters_base=64, depth=4, output_stride='16');
    # 64x64 keeps every intermediate spatial dim valid and even, so the
    # ConvTranspose output_padding bookkeeping is identical to the 512 reference.
    IN_DIM = 64
    BATCH = 1
    NUM_CLASSES = 21

    pg = ParamGen(seed=0)
    params = make_dilated_sunet64(pg, IN_DIM, num_classes=NUM_CLASSES,
                                  output_stride='16')

    x = jax.random.normal(jax.random.PRNGKey(0),
                          (BATCH, 3, IN_DIM, IN_DIM), jnp.float32)   # NCHW input

    out = dilated_sunet64_forward(x, params)
    out = jax.block_until_ready(out)

    assert out.shape == (BATCH, NUM_CLASSES, IN_DIM, IN_DIM), out.shape
    assert bool(jnp.all(jnp.isfinite(out)))
    print("KERNEL_OK")
</pallas_src>

<mosaic_0001>
module attributes {stable_mosaic.version = 11 : i64} {
  func.func @kernel(%arg0: i32, %arg1: memref<256x147xbf16, #tpu.memory_space<vmem>>, %arg2: memref<147x64xbf16, #tpu.memory_space<vmem>>, %arg3: memref<1x64xf32, #tpu.memory_space<vmem>>, %arg4: memref<1x64xf32, #tpu.memory_space<vmem>>, %arg5: memref<256x64xbf16, #tpu.memory_space<vmem>>) attributes {dimension_semantics = [#tpu.dimension_semantics<parallel>], iteration_bounds = array<i64: 4>, scalar_prefetch = 0 : i64, scratch_operands = 0 : i64, tpu.core_type = #tpu.core_type<tc>, window_params = [{transform_indices = @transform_0, window_bounds = array<i64: 256, 147>}, {pipeline_mode = #tpu.pipeline_mode<synchronous>, transform_indices = @transform_1, window_bounds = array<i64: 147, 64>}, {pipeline_mode = #tpu.pipeline_mode<synchronous>, transform_indices = @transform_2, window_bounds = array<i64: 1, 64>}, {pipeline_mode = #tpu.pipeline_mode<synchronous>, transform_indices = @transform_3, window_bounds = array<i64: 1, 64>}, {transform_indices = @transform_4, window_bounds = array<i64: 256, 64>}]} {
    %c0 = arith.constant 0 : index
    %c0_0 = arith.constant 0 : index
    %0 = vector.load %arg1[%c0, %c0_0] : memref<256x147xbf16, #tpu.memory_space<vmem>>, vector<256x147xbf16>
    %c0_1 = arith.constant 0 : index
    %c0_2 = arith.constant 0 : index
    %1 = vector.load %arg2[%c0_1, %c0_2] : memref<147x64xbf16, #tpu.memory_space<vmem>>, vector<147x64xbf16>
    %cst = arith.constant dense<0.000000e+00> : vector<256x64xf32>
    %2 = tpu.matmul %0, %1, %cst {dimension_numbers = #tpu.dot_dimension_numbers<[1], [0], [0], [1], [0, 0, 1, 1], [], []>} : vector<256x147xbf16>, vector<147x64xbf16>, vector<256x64xf32> -> vector<256x64xf32>
    %c0_3 = arith.constant 0 : index
    %c0_4 = arith.constant 0 : index
    %3 = vector.load %arg3[%c0_3, %c0_4] : memref<1x64xf32, #tpu.memory_space<vmem>>, vector<1x64xf32>
    %4 = vector.broadcast %3 : vector<1x64xf32> to vector<256x64xf32>
    %5 = arith.mulf %2, %4 : vector<256x64xf32>
    %c0_5 = arith.constant 0 : index
    %c0_6 = arith.constant 0 : index
    %6 = vector.load %arg4[%c0_5, %c0_6] : memref<1x64xf32, #tpu.memory_space<vmem>>, vector<1x64xf32>
    %7 = vector.broadcast %6 : vector<1x64xf32> to vector<256x64xf32>
    %8 = arith.addf %5, %7 : vector<256x64xf32>
    %cst_7 = arith.constant 0.000000e+00 : f32
    %9 = vector.broadcast %cst_7 : f32 to vector<256x64xf32>
    %10 = arith.maximumf %8, %9 : vector<256x64xf32>
    %11 = arith.truncf %10 : vector<256x64xf32> to vector<256x64xbf16>
    %c0_8 = arith.constant 0 : index
    %c0_9 = arith.constant 0 : index
    %12 = vector.load %arg5[%c0_8, %c0_9] : memref<256x64xbf16, #tpu.memory_space<vmem>>, vector<256x64xbf16>
    tpu.vector_store %arg5[%c0_8, %c0_9], %11 {strides = array<i32>} : memref<256x64xbf16, #tpu.memory_space<vmem>>, vector<256x64xbf16>,
    return
  }
  func.func @transform_0(%arg0: i32) -> (i32, i32) {
    %c0_i32 = arith.constant 0 : i32
    %c0_i32_0 = arith.constant 0 : i32
    return %arg0, %c0_i32 : i32, i32
  }
  func.func @transform_1(%arg0: i32) -> (i32, i32) {
    %c0_i32 = arith.constant 0 : i32
    %c0_i32_0 = arith.constant 0 : i32
    %c0_i32_1 = arith.constant 0 : i32
    return %c0_i32, %c0_i32_0 : i32, i32
  }
  func.func @transform_2(%arg0: i32) -> (i32, i32) {
    %c0_i32 = arith.constant 0 : i32
    %c0_i32_0 = arith.constant 0 : i32
    %c0_i32_1 = arith.constant 0 : i32
    return %c0_i32, %c0_i32_0 : i32, i32
  }
  func.func @transform_3(%arg0: i32) -> (i32, i32) {
    %c0_i32 = arith.constant 0 : i32
    %c0_i32_0 = arith.constant 0 : i32
    %c0_i32_1 = arith.constant 0 : i32
    return %c0_i32, %c0_i32_0 : i32, i32
  }
  func.func @transform_4(%arg0: i32) -> (i32, i32) {
    %c0_i32 = arith.constant 0 : i32
    %c0_i32_0 = arith.constant 0 : i32
    return %arg0, %c0_i32 : i32, i32
  }
}

</mosaic_0001>

<llo_original>
// kernel: _conv2d_impl.1
$region0: #{_conv2d_impl.1}
  #allocation0 [shape = 'u32[]', space=smem, size = 0x4, offset = 0x4, fixed_abs, tag = 'smem constant byte address 0x4 - core index']
  #allocation1 [shape = 'u32[144,128]{1,0:T(1,128)}', space=vmem, size = 0x12000, scoped, tag = 'internal scratch']
  %s0 = inlined_call_operand.vmem [shape: bf16[1024,147], index: 0, kind: input, shape index: {}]
  %s1 = inlined_call_operand.vmem [shape: bf16[147,64], index: 1, kind: input, shape index: {}]
  %s2 = inlined_call_operand.vmem [shape: f32[1,64], index: 2, kind: input, shape index: {}]
  %s3 = inlined_call_operand.vmem [shape: f32[1,64], index: 3, kind: input, shape index: {}]
  %s4 = inlined_call_operand.hbm [shape: bf16[1024,64], index: 4, kind: output, shape index: {}]
  %s5 = sld [smem:[#allocation0]]
  $region49: #{_conv2d_impl.1} parent=0
    _
  %s7 = ssub.s32 1, %s5
  %s8 = scalar_select 0, %s7, %s5
  $region1: #{_conv2d_impl.1} parent=0
    #allocation2 [shape = 'u8[131072]{0}', space=vmem, size = 0x20000, scoped, tag = 'output window, operand 0']
    #allocation3 [shape = 's32[2]{0}', space=sflag, size = 0x8, scoped, tag = 'scoped memory for _conv2d_impl.1']
    %9 = vsyncpa [#allocation3], 0
    %s10 = scalar_lea.sflag [#allocation3], 1
    %11 = vsyncpa %s10, 0
    loop: start=0, step=1, limit=6
    $region2: #{_conv2d_impl.1} parent=1 // loop_pre_header
      _
    $region3: #{_conv2d_impl.1} parent=1 // loop_header
      %s13 = sphi 0, %s17
      %p14 = scmp.ge.s32.totalorder %s13, 6
      %s23 = sphi 0, %s25
      %s26 = sphi 0, %s23
      %s27 = sphi 0, %s26
      %s43 = sphi 0, %s27
      %s47 = sphi 0, %s47
      %s49 = sphi 0, %s47
      %s50 = sphi 0, %s49
      %s64 = sphi 0, %s50
      %s68 = sphi 0, %s68
      %s70 = sphi 0, %s68
      %s71 = sphi 0, %s70
      %s85 = sphi 0, %s71
      %s89 = sphi 0, %s89
      %s91 = sphi 0, %s89
      %s92 = sphi 0, %s91
      %s106 = sphi 0, %s92
      %s112 = sphi 0, %s114
      %s115 = sphi 0, %s112
      %s116 = sphi 0, %s115
      %s132 = sphi 0, %s116
    $region4: #{_conv2d_impl.1} parent=1 // loop_header_branch
      %16 = sbr.rel (%p14) target = $region8
    $region5: #{_conv2d_impl.1} parent=1 // loop_body
      %s18 = ssub.s32 %s13, 1
      %s19 = ssub.s32 %s13, 2
      %s20 = sadd.s32 %s13, 1
      %s21 = ssub.s32 %s13, %s20
      %p22 = scmp.eq.s32.totalorder %s21, 0
      %s24 = sadd.s32 %s23, 1
      %s25 = scalar_select %p22, %s23, %s24
      %p28 = pneg %p22
      %p29 = scmp.eq.s32.totalorder %s13, 3
      %p30 = por %p28, %p29
      %p31 = scmp.ne.s32.totalorder %s23, %s26
      %p32 = scmp.eq.s32.totalorder %s13, 0
      %p33 = por %p31, %p32
      %p34 = scmp.ne.s32.totalorder %s23, %s26
      %p35 = scmp.eq.s32.totalorder %s18, 3
      %p36 = por %p34, %p35
      %p37 = scmp.ne.s32.totalorder %s26, %s27
      %p38 = scmp.eq.s32.totalorder %s18, 0
      %p39 = por %p37, %p38
      %p40 = scmp.ne.s32.totalorder %s26, %s27
      %p41 = scmp.eq.s32.totalorder %s19, 3
      %p42 = por %p40, %p41
      %p44 = scmp.ne.s32.totalorder %s27, %s43
      %p45 = scmp.eq.s32.totalorder %s19, 0
      %p46 = por %p44, %p45
      %s48 = sadd.s32 %s47, 1
      %p51 = scmp.eq.s32.totalorder %s13, 3
      %p52 = scmp.ne.s32.totalorder %s47, %s49
      %p53 = scmp.eq.s32.totalorder %s13, 0
      %p54 = por %p52, %p53
      %p55 = scmp.ne.s32.totalorder %s47, %s49
      %p56 = scmp.eq.s32.totalorder %s18, 3
      %p57 = por %p55, %p56
      %p58 = scmp.ne.s32.totalorder %s49, %s50
      %p59 = scmp.eq.s32.totalorder %s18, 0
      %p60 = por %p58, %p59
      %p61 = scmp.ne.s32.totalorder %s49, %s50
      %p62 = scmp.eq.s32.totalorder %s19, 3
      %p63 = por %p61, %p62
      %p65 = scmp.ne.s32.totalorder %s50, %s64
      %p66 = scmp.eq.s32.totalorder %s19, 0
      %p67 = por %p65, %p66
      %s69 = sadd.s32 %s68, 1
      %p72 = scmp.eq.s32.totalorder %s13, 3
      %p73 = scmp.ne.s32.totalorder %s68, %s70
      %p74 = scmp.eq.s32.totalorder %s13, 0
      %p75 = por %p73, %p74
      %p76 = scmp.ne.s32.totalorder %s68, %s70
      %p77 = scmp.eq.s32.totalorder %s18, 3
      %p78 = por %p76, %p77
      %p79 = scmp.ne.s32.totalorder %s70, %s71
      %p80 = scmp.eq.s32.totalorder %s18, 0
      %p81 = por %p79, %p80
      %p82 = scmp.ne.s32.totalorder %s70, %s71
      %p83 = scmp.eq.s32.totalorder %s19, 3
      %p84 = por %p82, %p83
      %p86 = scmp.ne.s32.totalorder %s71, %s85
      %p87 = scmp.eq.s32.totalorder %s19, 0
      %p88 = por %p86, %p87
      %s90 = sadd.s32 %s89, 1
      %p93 = scmp.eq.s32.totalorder %s13, 3
      %p94 = scmp.ne.s32.totalorder %s89, %s91
      %p95 = scmp.eq.s32.totalorder %s13, 0
      %p96 = por %p94, %p95
      %p97 = scmp.ne.s32.totalorder %s89, %s91
      %p98 = scmp.eq.s32.totalorder %s18, 3
      %p99 = por %p97, %p98
      %p100 = scmp.ne.s32.totalorder %s91, %s92
      %p101 = scmp.eq.s32.totalorder %s18, 0
      %p102 = por %p100, %p101
      %p103 = scmp.ne.s32.totalorder %s91, %s92
      %p104 = scmp.eq.s32.totalorder %s19, 3
      %p105 = por %p103, %p104
      %p107 = scmp.ne.s32.totalorder %s92, %s106
      %p108 = scmp.eq.s32.totalorder %s19, 0
      %p109 = por %p107, %p108
      %s110 = ssub.s32 %s13, %s20
      %p111 = scmp.eq.s32.totalorder %s110, 0
      %s113 = sadd.s32 %s112, 1
      %s114 = scalar_select %p111, %s112, %s113
      %p117 = pneg %p111
      %p118 = scmp.eq.s32.totalorder %s13, 3
      %p119 = por %p117, %p118
      %p120 = scmp.ne.s32.totalorder %s112, %s115
      %p121 = scmp.eq.s32.totalorder %s13, 0
      %p122 = por %p120, %p121
      %p123 = scmp.ne.s32.totalorder %s112, %s115
      %p124 = scmp.eq.s32.totalorder %s18, 3
      %p125 = por %p123, %p124
      %p126 = scmp.ne.s32.totalorder %s115, %s116
      %p127 = scmp.eq.s32.totalorder %s18, 0
      %p128 = por %p126, %p127
      %p129 = scmp.ne.s32.totalorder %s115, %s116
      %p130 = scmp.eq.s32.totalorder %s19, 3
      %p131 = por %p129, %p130
      %p133 = scmp.ne.s32.totalorder %s116, %s132
      %p134 = scmp.eq.s32.totalorder %s19, 0
      %p135 = por %p133, %p134
      %p136 = scmp.le.s32.totalorder 1, %s13
      %p137 = scmp.lt.s32.totalorder %s13, 5
      %p138 = pnand %p136, %p137
      %p139 = pneg %p138
      // Predicated region
      $region9: #{_conv2d_impl.1} parent=5 // pred_check
        _
      $region10: #{_conv2d_impl.1} parent=5 // pred_check_branch
        %141 = sbr.rel (%p138) target = $region12
      $region11: #{_conv2d_impl.1} parent=5 // pred_region
        %s142 = ssub.s32 %s13, 1
        // Predicated region
        $region13: #{_conv2d_impl.1} parent=11 // pred_check
          %p143 = pneg %p60
        $region14: #{_conv2d_impl.1} parent=11 // pred_check_branch
          %145 = sbr.rel (%p143) target = $region16
        $region15: #{_conv2d_impl.1} parent=11 // pred_region
          _
        $region16: #{_conv2d_impl.1} parent=11 // pred_fallthru
          _
        // Predicated region
        $region17: #{_conv2d_impl.1} parent=11 // pred_check
          %p146 = pneg %p81
        $region18: #{_conv2d_impl.1} parent=11 // pred_check_branch
          %148 = sbr.rel (%p146) target = $region20
        $region19: #{_conv2d_impl.1} parent=11 // pred_region
          _
        $region20: #{_conv2d_impl.1} parent=11 // pred_fallthru
          _
        // Predicated region
        $region21: #{_conv2d_impl.1} parent=11 // pred_check
          %p149 = pneg %p102
        $region22: #{_conv2d_impl.1} parent=11 // pred_check_branch
          %151 = sbr.rel (%p149) target = $region24
        $region23: #{_conv2d_impl.1} parent=11 // pred_region
          _
        $region24: #{_conv2d_impl.1} parent=11 // pred_fallthru
          _
      $region12: #{_conv2d_impl.1} parent=5 // pred_fallthru
        _
      %p152 = scmp.lt.s32.totalorder %s13, 4
      // Predicated region
      $region25: #{_conv2d_impl.1} parent=5 // pred_check
        %p153 = pneg %p152
      $region26: #{_conv2d_impl.1} parent=5 // pred_check_branch
        %155 = sbr.rel (%p153) target = $region28
      $region27: #{_conv2d_impl.1} parent=5 // pred_region
        // Predicated region
        $region29: #{_conv2d_impl.1} parent=27 // pred_check
          %p156 = pneg %p33
        $region30: #{_conv2d_impl.1} parent=27 // pred_check_branch
          %158 = sbr.rel (%p156) target = $region32
        $region31: #{_conv2d_impl.1} parent=27 // pred_region
          %s159 = smul.u32 32, %s13
          %p160 = scmp.lt.s32.totalorder %s159, 127
          %s161 = scalar_select %p160, %s159, 127
          %s162 = smul.addr %s161, 2
          %s163 = smul.addr %s162, 4
          %s164 = scalar_lea.vmem %s0, %s163
          %s165 = smul.u32 32, %s13
        $region32: #{_conv2d_impl.1} parent=27 // pred_fallthru
          _
      $region28: #{_conv2d_impl.1} parent=5 // pred_fallthru
        _
      %p166 = scmp.le.s32.totalorder 1, %s13
      %p167 = scmp.lt.s32.totalorder %s13, 5
      %p168 = pnand %p166, %p167
      %p169 = pneg %p168
      // Predicated region
      $region33: #{_conv2d_impl.1} parent=5 // pred_check
        _
      $region34: #{_conv2d_impl.1} parent=5 // pred_check_branch
        %171 = sbr.rel (%p168) target = $region36
      $region35: #{_conv2d_impl.1} parent=5 // pred_region
        %s172 = ssub.s32 %s13, 1
        %s173 = smul.u32 32, %s18
        %p174 = scmp.lt.s32.totalorder %s173, 127
        %s175 = scalar_select %p174, %s173, 127
        %s176 = smul.addr %s175, 2
        %s177 = smul.addr %s176, 4
        %s178 = scalar_lea.vmem %s0, %s177
        %p179 = pneg %p39
        %p180 = pneg %p36
        %p181 = pneg %p60
        %p182 = pneg %p57
        %p183 = pneg %p81
        %p184 = pneg %p78
        %p185 = pneg %p102
        %p186 = pneg %p99
        %p187 = pneg %p128
        %p188 = pneg %p125
        %s189 = sand.u32 %s115, 1
        %s190 = scalar_lea.sflag [#allocation3], %s189
        %s191 = sand.u32 %s115, 1
        %s192 = smul.addr %s191, 128
        %s193 = scalar_lea.vmem [#allocation2], %s192
        %s194 = smul.u32 32, %s18
        %p195 = scmp.lt.s32.totalorder %s194, 127
        %s196 = scalar_select %p195, %s194, 127
        %s197 = smul.addr %s196, 2
        %s198 = smul.addr %s197, 4
        %s199 = scalar_lea.vmem %s0, %s198
        %s200 = smul.u32 32, %s18
        %s201 = smul.u32 32, %s18
        %v203 = vld [vmem:[%s199] sm:$0xff]
        %v204 = vld [vmem:[%s199 + $0x8] sm:$0xff]
        %v205 = vld [vmem:[%s199 + $0x10] sm:$0xff]
        %v206 = vld [vmem:[%s199 + $0x18] sm:$0xff]
        %v207 = vld [vmem:[%s199 + $0x20] sm:$0xff]
        %v208 = vld [vmem:[%s199 + $0x28] sm:$0xff]
        %v209 = vld [vmem:[%s199 + $0x30] sm:$0xff]
        %v210 = vld [vmem:[%s199 + $0x38] sm:$0xff]
        %v211 = vld [vmem:[%s199 + $0x40] sm:$0xff]
        %v212 = vld [vmem:[%s199 + $0x48] sm:$0xff]
        %v213 = vld [vmem:[%s199 + $0x50] sm:$0xff]
        %v214 = vld [vmem:[%s199 + $0x58] sm:$0xff]
        %v215 = vld [vmem:[%s199 + $0x60] sm:$0xff]
        %v216 = vld [vmem:[%s199 + $0x68] sm:$0xff]
        %v217 = vld [vmem:[%s199 + $0x70] sm:$0xff]
        %v218 = vld [vmem:[%s199 + $0x78] sm:$0xff]
        %v219 = vld [vmem:[%s199 + $0x80] sm:$0xff]
        %v220 = vld [vmem:[%s199 + $0x88] sm:$0xff]
        %v221 = vld [vmem:[%s199 + $0x90] sm:$0xff]
        %v222 = vld [vmem:[%s199 + $0x98] sm:$0xff]
        %v223 = vld [vmem:[%s199 + $0xa0] sm:$0xff]
        %v224 = vld [vmem:[%s199 + $0xa8] sm:$0xff]
        %v225 = vld [vmem:[%s199 + $0xb0] sm:$0xff]
        %v226 = vld [vmem:[%s199 + $0xb8] sm:$0xff]
        %v227 = vld [vmem:[%s199 + $0xc0] sm:$0xff]
        %v228 = vld [vmem:[%s199 + $0xc8] sm:$0xff]
        %v229 = vld [vmem:[%s199 + $0xd0] sm:$0xff]
        %v230 = vld [vmem:[%s199 + $0xd8] sm:$0xff]
        %v231 = vld [vmem:[%s199 + $0xe0] sm:$0xff]
        %v232 = vld [vmem:[%s199 + $0xe8] sm:$0xff]
        %v233 = vld [vmem:[%s199 + $0xf0] sm:$0xff]
        %v234 = vld [vmem:[%s199 + $0xf8] sm:$0xff]
        %v235 = vld [vmem:[%s1] sm:$0xf]
        %v236 = vld [vmem:[%s1 + $0x4] sm:$0xf]
        %v237 = vld [vmem:[%s1 + $0x8] sm:$0xf]
        %v238 = vld [vmem:[%s1 + $0xc] sm:$0xf]
        %v239 = vld [vmem:[%s1 + $0x10] sm:$0xf]
        %v240 = vld [vmem:[%s1 + $0x14] sm:$0xf]
        %v241 = vld [vmem:[%s1 + $0x18] sm:$0xf]
        %v242 = vld [vmem:[%s1 + $0x1c] sm:$0xf]
        %v243 = vld [vmem:[%s1 + $0x20] sm:$0xf]
        %v244 = vld [vmem:[%s1 + $0x24] sm:$0xf]
        %v245 = vld [vmem:[%s1 + $0x28] sm:$0xf]
        %v246 = vld [vmem:[%s1 + $0x2c] sm:$0xf]
        %v247 = vld [vmem:[%s1 + $0x30] sm:$0xf]
        %v248 = vld [vmem:[%s1 + $0x34] sm:$0xf]
        %v249 = vld [vmem:[%s1 + $0x38] sm:$0xf]
        %v250 = vld [vmem:[%s1 + $0x3c] sm:$0xf]
        %v251 = vld [vmem:[%s1 + $0x40] sm:$0xf]
        %v252 = vld [vmem:[%s1 + $0x44] sm:$0xf]
        %v253 = vld [vmem:[%s1 + $0x48] sm:$0x3]
        %v286 = vunpack.c.l.b16 %v203
        %v287 = vunpack.c.h.b16 %v203
        %v288 = vunpack.c.l.b16 %v204
        %v289 = vunpack.c.h.b16 %v204
        %v290 = vunpack.c.l.b16 %v205
        %v291 = vunpack.c.h.b16 %v205
        %v292 = vunpack.c.l.b16 %v206
        %v293 = vunpack.c.h.b16 %v206
        %v294 = vunpack.c.l.b16 %v207
        %v295 = vunpack.c.h.b16 %v207
        %v296 = vunpack.c.l.b16 %v208
        %v297 = vunpack.c.h.b16 %v208
        %v298 = vunpack.c.l.b16 %v209
        %v299 = vunpack.c.h.b16 %v209
        %v300 = vunpack.c.l.b16 %v210
        %v301 = vunpack.c.h.b16 %v210
        %v302 = vunpack.c.l.b16 %v211
        %v303 = vunpack.c.h.b16 %v211
        %v304 = vunpack.c.l.b16 %v212
        %v305 = vunpack.c.h.b16 %v212
        %v306 = vunpack.c.l.b16 %v213
        %v307 = vunpack.c.h.b16 %v213
        %v308 = vunpack.c.l.b16 %v214
        %v309 = vunpack.c.h.b16 %v214
        %v310 = vunpack.c.l.b16 %v215
        %v311 = vunpack.c.h.b16 %v215
        %v312 = vunpack.c.l.b16 %v216
        %v313 = vunpack.c.h.b16 %v216
        %v314 = vunpack.c.l.b16 %v217
        %v315 = vunpack.c.h.b16 %v217
        %v316 = vunpack.c.l.b16 %v218
        %v317 = vunpack.c.h.b16 %v218
        %v318 = vunpack.c.l.b16 %v219
        %v319 = vunpack.c.h.b16 %v219
        %v320 = vunpack.c.l.b16 %v220
        %v321 = vunpack.c.h.b16 %v220
        %v322 = vunpack.c.l.b16 %v221
        %v323 = vunpack.c.h.b16 %v221
        %v324 = vunpack.c.l.b16 %v222
        %v325 = vunpack.c.h.b16 %v222
        %v326 = vunpack.c.l.b16 %v223
        %v327 = vunpack.c.h.b16 %v223
        %v328 = vunpack.c.l.b16 %v224
        %v329 = vunpack.c.h.b16 %v224
        %v330 = vunpack.c.l.b16 %v225
        %v331 = vunpack.c.h.b16 %v225
        %v332 = vunpack.c.l.b16 %v226
        %v333 = vunpack.c.h.b16 %v226
        %v334 = vunpack.c.l.b16 %v227
        %v335 = vunpack.c.h.b16 %v227
        %v336 = vunpack.c.l.b16 %v228
        %v337 = vunpack.c.h.b16 %v228
        %v338 = vunpack.c.l.b16 %v229
        %v339 = vunpack.c.h.b16 %v229
        %v340 = vunpack.c.l.b16 %v230
        %v341 = vunpack.c.h.b16 %v230
        %v342 = vunpack.c.l.b16 %v231
        %v343 = vunpack.c.h.b16 %v231
        %v344 = vunpack.c.l.b16 %v232
        %v345 = vunpack.c.h.b16 %v232
        %v346 = vunpack.c.l.b16 %v233
        %v347 = vunpack.c.h.b16 %v233
        %v348 = vunpack.c.l.b16 %v234
        %v349 = vunpack.c.h.b16 %v234
        %v350 = vpack.c.b16 %v288, %v286
        %v351 = vpack.c.b16 %v289, %v287
        %v352 = vpack.c.b16 %v292, %v290
        %v353 = vpack.c.b16 %v293, %v291
        %v354 = vpack.c.b16 %v296, %v294
        %v355 = vpack.c.b16 %v297, %v295
        %v356 = vpack.c.b16 %v300, %v298
        %v357 = vpack.c.b16 %v301, %v299
        %v358 = vpack.c.b16 %v304, %v302
        %v359 = vpack.c.b16 %v305, %v303
        %v360 = vpack.c.b16 %v308, %v306
        %v361 = vpack.c.b16 %v309, %v307
        %v362 = vpack.c.b16 %v312, %v310
        %v363 = vpack.c.b16 %v313, %v311
        %v364 = vpack.c.b16 %v316, %v314
        %v365 = vpack.c.b16 %v317, %v315
        %v366 = vpack.c.b16 %v320, %v318
        %v367 = vpack.c.b16 %v321, %v319
        %v368 = vpack.c.b16 %v324, %v322
        %v369 = vpack.c.b16 %v325, %v323
        %v370 = vpack.c.b16 %v328, %v326
        %v371 = vpack.c.b16 %v329, %v327
        %v372 = vpack.c.b16 %v332, %v330
        %v373 = vpack.c.b16 %v333, %v331
        %v374 = vpack.c.b16 %v336, %v334
        %v375 = vpack.c.b16 %v337, %v335
        %v376 = vpack.c.b16 %v340, %v338
        %v377 = vpack.c.b16 %v341, %v339
        %v378 = vpack.c.b16 %v344, %v342
        %v379 = vpack.c.b16 %v345, %v343
        %v380 = vpack.c.b16 %v348, %v346
        %v381 = vpack.c.b16 %v349, %v347
        %v417 = vunpack.c.l.b16 %v235
        %v418 = vunpack.c.l.b16 %v236
        %v419 = vunpack.c.l.b16 %v237
        %v420 = vunpack.c.l.b16 %v238
        %v421 = vunpack.c.l.b16 %v239
        %v422 = vunpack.c.l.b16 %v240
        %v423 = vunpack.c.l.b16 %v241
        %v424 = vunpack.c.l.b16 %v242
        %v425 = vunpack.c.l.b16 %v243
        %v426 = vunpack.c.l.b16 %v244
        %v427 = vunpack.c.l.b16 %v245
        %v428 = vunpack.c.l.b16 %v246
        %v429 = vunpack.c.l.b16 %v247
        %v430 = vunpack.c.l.b16 %v248
        %v431 = vunpack.c.l.b16 %v249
        %v432 = vunpack.c.l.b16 %v250
        %v433 = vunpack.c.l.b16 %v251
        %v434 = vunpack.c.l.b16 %v252
        %v435 = vunpack.c.l.b16 %v253
        %v436 = vpack.c.b16 %v418, %v417
        %v437 = vpack.c.b16 %v420, %v419
        %v438 = vpack.c.b16 %v422, %v421
        %v439 = vpack.c.b16 %v424, %v423
        %v440 = vpack.c.b16 %v426, %v425
        %v441 = vpack.c.b16 %v428, %v427
        %v442 = vpack.c.b16 %v430, %v429
        %v443 = vpack.c.b16 %v432, %v431
        %v444 = vpack.c.b16 %v434, %v433
        %v445 = vpack.c.b16 %v435, %v435
        %vm455 = vcmask 154624
        %v457 = vsel %vm455, %v351, 0
        %v460 = vsel %vm455, %v353, 0
        %v463 = vsel %vm455, %v355, 0
        %v466 = vsel %vm455, %v357, 0
        %v469 = vsel %vm455, %v359, 0
        %v472 = vsel %vm455, %v361, 0
        %v475 = vsel %vm455, %v363, 0
        %v478 = vsel %vm455, %v365, 0
        %v481 = vsel %vm455, %v367, 0
        %v484 = vsel %vm455, %v369, 0
        %v487 = vsel %vm455, %v371, 0
        %v490 = vsel %vm455, %v373, 0
        %v493 = vsel %vm455, %v375, 0
        %v496 = vsel %vm455, %v377, 0
        %v499 = vsel %vm455, %v379, 0
        %v502 = vsel %vm455, %v381, 0
        %vm504 = vcmask 1040384
        %vm505 = vcmask 1041408
        %v506 = vsel %vm504, 4294967295, 65535
        %v507 = vsel %vm505, %v506, 0
        %v509 = vand.u32 %v445, %v507
        %511 = vmatprep.subr.bf16.mxu0 0
        %512 = vmatpush1.bf16.msra.mxu0 %v436
        %513 = vmatprep.subr.bf16.mxu0 0
        %514 = vmatpush1.bf16.msra.mxu0 %v437
        %515 = vmatprep.subr.bf16.mxu0 0
        %516 = vmatpush1.bf16.msra.mxu0 %v438
        %517 = vmatprep.subr.bf16.mxu0 0
        %518 = vmatpush1.bf16.msra.mxu0 %v439
        %519 = vmatprep.subr.bf16.mxu0 0
        %520 = vmatpush1.bf16.msra.mxu0 %v440
        %521 = vmatprep.subr.bf16.mxu0 0
        %522 = vmatpush1.bf16.msra.mxu0 %v441
        %523 = vmatprep.subr.bf16.mxu0 0
        %524 = vmatpush1.bf16.msra.mxu0 %v442
        %525 = vmatprep.subr.bf16.mxu0 0
        %526 = vmatpush1.bf16.msra.mxu0 %v443
        %527 = vmatprep.subr.bf16.mxu0 0
        %528 = vmatpush1.bf16.msra.mxu0 %v444
        %529 = vmatprep.subr.bf16.mxu0 0
        %530 = vmatpush1.bf16.msra.mxu0 %v509
        %531 = vmatprep.subr.bf16.mxu0 0
        %532 = vmatpush1.bf16.msra.mxu0 0
        %533 = vmatprep.subr.bf16.mxu0 0
        %534 = vmatpush1.bf16.msra.mxu0 0
        %535 = vmatprep.subr.bf16.mxu0 0
        %536 = vmatpush1.bf16.msra.mxu0 0
        %537 = vmatprep.subr.bf16.mxu0 0
        %538 = vmatpush1.bf16.msra.mxu0 0
        %539 = vmatprep.subr.bf16.mxu0 0
        %540 = vmatpush1.bf16.msra.mxu0 0
        %541 = vmatprep.subr.bf16.mxu0 0
        %542 = vmatpush1.bf16.msra.mxu0 0
        %543 = vmatprep.mubr.bf16.mxu0 %v457
        %544 = vmatmul.mubr.bf16.gmra.mrb[0].mxu0 %v350
        %v545 = vpop.f32.mrb[0].mxu0
        %v546 = vadd.f32 0.0, %v545
        %v547 = vpop.f32.mrb[0].mxu0
        %v548 = vpop.f32.mrb[0].mxu0
        %v549 = vadd.f32 0.0, %v548
        %v550 = vpop.f32.mrb[0].mxu0
        %551 = vmatprep.mubr.bf16.mxu0 %v460
        %552 = vmatmul.mubr.bf16.gmra.mrb[0].mxu0 %v352
        %v553 = vpop.f32.mrb[0].mxu0
        %v554 = vadd.f32 0.0, %v553
        %v555 = vpop.f32.mrb[0].mxu0
        %v556 = vpop.f32.mrb[0].mxu0
        %v557 = vadd.f32 0.0, %v556
        %v558 = vpop.f32.mrb[0].mxu0
        %559 = vmatprep.mubr.bf16.mxu0 %v463
        %560 = vmatmul.mubr.bf16.gmra.mrb[0].mxu0 %v354
        %v561 = vpop.f32.mrb[0].mxu0
        %v562 = vadd.f32 0.0, %v561
        %v563 = vpop.f32.mrb[0].mxu0
        %v564 = vpop.f32.mrb[0].mxu0
        %v565 = vadd.f32 0.0, %v564
        %v566 = vpop.f32.mrb[0].mxu0
        %567 = vmatprep.mubr.bf16.mxu0 %v466
        %568 = vmatmul.mubr.bf16.gmra.mrb[0].mxu0 %v356
        %v569 = vpop.f32.mrb[0].mxu0
        %v570 = vadd.f32 0.0, %v569
        %v571 = vpop.f32.mrb[0].mxu0
        %v572 = vpop.f32.mrb[0].mxu0
        %v573 = vadd.f32 0.0, %v572
        %v574 = vpop.f32.mrb[0].mxu0
        %575 = vmatprep.mubr.bf16.mxu0 %v469
        %576 = vmatmul.mubr.bf16.gmra.mrb[0].mxu0 %v358
        %v577 = vpop.f32.mrb[0].mxu0
        %v578 = vadd.f32 0.0, %v577
        %v579 = vpop.f32.mrb[0].mxu0
        %v580 = vpop.f32.mrb[0].mxu0
        %v581 = vadd.f32 0.0, %v580
        %v582 = vpop.f32.mrb[0].mxu0
        %583 = vmatprep.mubr.bf16.mxu0 %v472
        %584 = vmatmul.mubr.bf16.gmra.mrb[0].mxu0 %v360
        %v585 = vpop.f32.mrb[0].mxu0
        %v586 = vadd.f32 0.0, %v585
        %v587 = vpop.f32.mrb[0].mxu0
        %v588 = vpop.f32.mrb[0].mxu0
        %v589 = vadd.f32 0.0, %v588
        %v590 = vpop.f32.mrb[0].mxu0
        %591 = vmatprep.mubr.bf16.mxu0 %v475
        %592 = vmatmul.mubr.bf16.gmra.mrb[0].mxu0 %v362
        %v593 = vpop.f32.mrb[0].mxu0
        %v594 = vadd.f32 0.0, %v593
        %v595 = vpop.f32.mrb[0].mxu0
        %v596 = vpop.f32.mrb[0].mxu0
        %v597 = vadd.f32 0.0, %v596
        %v598 = vpop.f32.mrb[0].mxu0
        %599 = vmatprep.mubr.bf16.mxu0 %v478
        %600 = vmatmul.mubr.bf16.gmra.mrb[0].mxu0 %v364
        %v601 = vpop.f32.mrb[0].mxu0
        %v602 = vadd.f32 0.0, %v601
        %v603 = vpop.f32.mrb[0].mxu0
        %v604 = vpop.f32.mrb[0].mxu0
        %v605 = vadd.f32 0.0, %v604
        %v606 = vpop.f32.mrb[0].mxu0
        %607 = vmatprep.mubr.bf16.mxu0 %v481
        %608 = vmatmul.mubr.bf16.gmra.mrb[0].mxu0 %v366
        %v609 = vpop.f32.mrb[0].mxu0
        %v610 = vadd.f32 0.0, %v609
        %v611 = vpop.f32.mrb[0].mxu0
        %v612 = vpop.f32.mrb[0].mxu0
        %v613 = vadd.f32 0.0, %v612
        %v614 = vpop.f32.mrb[0].mxu0
        %615 = vmatprep.mubr.bf16.mxu0 %v484
        %616 = vmatmul.mubr.bf16.gmra.mrb[0].mxu0 %v368
        %v617 = vpop.f32.mrb[0].mxu0
        %v618 = vadd.f32 0.0, %v617
        %v619 = vpop.f32.mrb[0].mxu0
        %v620 = vpop.f32.mrb[0].mxu0
        %v621 = vadd.f32 0.0, %v620
        %v622 = vpop.f32.mrb[0].mxu0
        %623 = vmatprep.mubr.bf16.mxu0 %v487
        %624 = vmatmul.mubr.bf16.gmra.mrb[0].mxu0 %v370
        %v625 = vpop.f32.mrb[0].mxu0
        %v626 = vadd.f32 0.0, %v625
        %v627 = vpop.f32.mrb[0].mxu0
        %v628 = vpop.f32.mrb[0].mxu0
        %v629 = vadd.f32 0.0, %v628
        %v630 = vpop.f32.mrb[0].mxu0
        %631 = vmatprep.mubr.bf16.mxu0 %v490
        %632 = vmatmul.mubr.bf16.gmra.mrb[0].mxu0 %v372
        %v633 = vpop.f32.mrb[0].mxu0
        %v634 = vadd.f32 0.0, %v633
        %v635 = vpop.f32.mrb[0].mxu0
        %v636 = vpop.f32.mrb[0].mxu0
        %v637 = vadd.f32 0.0, %v636
        %v638 = vpop.f32.mrb[0].mxu0
        %639 = vmatprep.mubr.bf16.mxu0 %v493
        %640 = vmatmul.mubr.bf16.gmra.mrb[0].mxu0 %v374
        %v641 = vpop.f32.mrb[0].mxu0
        %v642 = vadd.f32 0.0, %v641
        %v643 = vpop.f32.mrb[0].mxu0
        %v644 = vpop.f32.mrb[0].mxu0
        %v645 = vadd.f32 0.0, %v644
        %v646 = vpop.f32.mrb[0].mxu0
        %647 = vmatprep.mubr.bf16.mxu0 %v496
        %648 = vmatmul.mubr.bf16.gmra.mrb[0].mxu0 %v376
        %v649 = vpop.f32.mrb[0].mxu0
        %v650 = vadd.f32 0.0, %v649
        %v651 = vpop.f32.mrb[0].mxu0
        %v652 = vpop.f32.mrb[0].mxu0
        %v653 = vadd.f32 0.0, %v652
        %v654 = vpop.f32.mrb[0].mxu0
        %655 = vmatprep.mubr.bf16.mxu0 %v499
        %656 = vmatmul.mubr.bf16.gmra.mrb[0].mxu0 %v378
        %v657 = vpop.f32.mrb[0].mxu0
        %v658 = vadd.f32 0.0, %v657
        %v659 = vpop.f32.mrb[0].mxu0
        %v660 = vpop.f32.mrb[0].mxu0
        %v661 = vadd.f32 0.0, %v660
        %v662 = vpop.f32.mrb[0].mxu0
        %663 = vmatprep.mubr.bf16.mxu0 %v502
        %664 = vmatmul.mubr.bf16.gmra.mrb[0].mxu0 %v380
        %v665 = vpop.f32.mrb[0].mxu0
        %v666 = vadd.f32 0.0, %v665
        %v667 = vpop.f32.mrb[0].mxu0
        %v668 = vpop.f32.mrb[0].mxu0
        %v669 = vadd.f32 0.0, %v668
        %v670 = vpop.f32.mrb[0].mxu0
        %671 = vdwg.mxu0
        %v672 = vld [vmem:[%s2] sm:$0x1]
        %v674 = vlaneseq
        %v675 = vshrl.u32 %v674, 7
        %v676 = vsub.s32 0, %v675
        %v677 = vrot.slane %v672, %v676
        %v679 = vmul.f32 %v546, %v677
        %v680 = vmul.f32 %v549, %v677
        %v681 = vmul.f32 %v554, %v677
        %v682 = vmul.f32 %v557, %v677
        %v683 = vmul.f32 %v562, %v677
        %v684 = vmul.f32 %v565, %v677
        %v685 = vmul.f32 %v570, %v677
        %v686 = vmul.f32 %v573, %v677
        %v687 = vmul.f32 %v578, %v677
        %v688 = vmul.f32 %v581, %v677
        %v689 = vmul.f32 %v586, %v677
        %v690 = vmul.f32 %v589, %v677
        %v691 = vmul.f32 %v594, %v677
        %v692 = vmul.f32 %v597, %v677
        %v693 = vmul.f32 %v602, %v677
        %v694 = vmul.f32 %v605, %v677
        %v695 = vmul.f32 %v610, %v677
        %v696 = vmul.f32 %v613, %v677
        %v697 = vmul.f32 %v618, %v677
        %v698 = vmul.f32 %v621, %v677
        %v699 = vmul.f32 %v626, %v677
        %v700 = vmul.f32 %v629, %v677
        %v701 = vmul.f32 %v634, %v677
        %v702 = vmul.f32 %v637, %v677
        %v703 = vmul.f32 %v642, %v677
        %v704 = vmul.f32 %v645, %v677
        %v705 = vmul.f32 %v650, %v677
        %v706 = vmul.f32 %v653, %v677
        %v707 = vmul.f32 %v658, %v677
        %v708 = vmul.f32 %v661, %v677
        %v709 = vmul.f32 %v666, %v677
        %v710 = vmul.f32 %v669, %v677
        %v711 = vld [vmem:[%s3] sm:$0x1]
        %v713 = vlaneseq
        %v714 = vshrl.u32 %v713, 7
        %v715 = vsub.s32 0, %v714
        %v716 = vrot.slane %v711, %v715
        %v718 = vadd.f32 %v679, %v716
        %v719 = vadd.f32 %v680, %v716
        %v720 = vadd.f32 %v681, %v716
        %v721 = vadd.f32 %v682, %v716
        %v722 = vadd.f32 %v683, %v716
        %v723 = vadd.f32 %v684, %v716
        %v724 = vadd.f32 %v685, %v716
        %v725 = vadd.f32 %v686, %v716
        %v726 = vadd.f32 %v687, %v716
        %v727 = vadd.f32 %v688, %v716
        %v728 = vadd.f32 %v689, %v716
        %v729 = vadd.f32 %v690, %v716
        %v730 = vadd.f32 %v691, %v716
        %v731 = vadd.f32 %v692, %v716
        %v732 = vadd.f32 %v693, %v716
        %v733 = vadd.f32 %v694, %v716
        %v734 = vadd.f32 %v695, %v716
        %v735 = vadd.f32 %v696, %v716
        %v736 = vadd.f32 %v697, %v716
        %v737 = vadd.f32 %v698, %v716
        %v738 = vadd.f32 %v699, %v716
        %v739 = vadd.f32 %v700, %v716
        %v740 = vadd.f32 %v701, %v716
        %v741 = vadd.f32 %v702, %v716
        %v742 = vadd.f32 %v703, %v716
        %v743 = vadd.f32 %v704, %v716
        %v744 = vadd.f32 %v705, %v716
        %v745 = vadd.f32 %v706, %v716
        %v746 = vadd.f32 %v707, %v716
        %v747 = vadd.f32 %v708, %v716
        %v748 = vadd.f32 %v709, %v716
        %v749 = vadd.f32 %v710, %v716
        %v750 = vmax.f32 %v718, 0.0
        %v751 = vmax.f32 %v719, 0.0
        %v752 = vmax.f32 %v720, 0.0
        %v753 = vmax.f32 %v721, 0.0
        %v754 = vmax.f32 %v722, 0.0
        %v755 = vmax.f32 %v723, 0.0
        %v756 = vmax.f32 %v724, 0.0
        %v757 = vmax.f32 %v725, 0.0
        %v758 = vmax.f32 %v726, 0.0
        %v759 = vmax.f32 %v727, 0.0
        %v760 = vmax.f32 %v728, 0.0
        %v761 = vmax.f32 %v729, 0.0
        %v762 = vmax.f32 %v730, 0.0
        %v763 = vmax.f32 %v731, 0.0
        %v764 = vmax.f32 %v732, 0.0
        %v765 = vmax.f32 %v733, 0.0
        %v766 = vmax.f32 %v734, 0.0
        %v767 = vmax.f32 %v735, 0.0
        %v768 = vmax.f32 %v736, 0.0
        %v769 = vmax.f32 %v737, 0.0
        %v770 = vmax.f32 %v738, 0.0
        %v771 = vmax.f32 %v739, 0.0
        %v772 = vmax.f32 %v740, 0.0
        %v773 = vmax.f32 %v741, 0.0
        %v774 = vmax.f32 %v742, 0.0
        %v775 = vmax.f32 %v743, 0.0
        %v776 = vmax.f32 %v744, 0.0
        %v777 = vmax.f32 %v745, 0.0
        %v778 = vmax.f32 %v746, 0.0
        %v779 = vmax.f32 %v747, 0.0
        %v780 = vmax.f32 %v748, 0.0
        %v781 = vmax.f32 %v749, 0.0
        %v782 = vpack.c.bf16 %v751, %v750
        %v783 = vpack.c.bf16 %v753, %v752
        %v784 = vpack.c.bf16 %v755, %v754
        %v785 = vpack.c.bf16 %v757, %v756
        %v786 = vpack.c.bf16 %v759, %v758
        %v787 = vpack.c.bf16 %v761, %v760
        %v788 = vpack.c.bf16 %v763, %v762
        %v789 = vpack.c.bf16 %v765, %v764
        %v790 = vpack.c.bf16 %v767, %v766
        %v791 = vpack.c.bf16 %v769, %v768
        %v792 = vpack.c.bf16 %v771, %v770
        %v793 = vpack.c.bf16 %v773, %v772
        %v794 = vpack.c.bf16 %v775, %v774
        %v795 = vpack.c.bf16 %v777, %v776
        %v796 = vpack.c.bf16 %v779, %v778
        %v797 = vpack.c.bf16 %v781, %v780
        %v814 = vunpack.c.l.b16 %v782
        %v815 = vunpack.c.h.b16 %v782
        %v816 = vunpack.c.l.b16 %v783
        %v817 = vunpack.c.h.b16 %v783
        %v818 = vunpack.c.l.b16 %v784
        %v819 = vunpack.c.h.b16 %v784
        %v820 = vunpack.c.l.b16 %v785
        %v821 = vunpack.c.h.b16 %v785
        %v822 = vunpack.c.l.b16 %v786
        %v823 = vunpack.c.h.b16 %v786
        %v824 = vunpack.c.l.b16 %v787
        %v825 = vunpack.c.h.b16 %v787
        %v826 = vunpack.c.l.b16 %v788
        %v827 = vunpack.c.h.b16 %v788
        %v828 = vunpack.c.l.b16 %v789
        %v829 = vunpack.c.h.b16 %v789
        %v830 = vunpack.c.l.b16 %v790
        %v831 = vunpack.c.h.b16 %v790
        %v832 = vunpack.c.l.b16 %v791
        %v833 = vunpack.c.h.b16 %v791
        %v834 = vunpack.c.l.b16 %v792
        %v835 = vunpack.c.h.b16 %v792
        %v836 = vunpack.c.l.b16 %v793
        %v837 = vunpack.c.h.b16 %v793
        %v838 = vunpack.c.l.b16 %v794
        %v839 = vunpack.c.h.b16 %v794
        %v840 = vunpack.c.l.b16 %v795
        %v841 = vunpack.c.h.b16 %v795
        %v842 = vunpack.c.l.b16 %v796
        %v843 = vunpack.c.h.b16 %v796
        %v844 = vunpack.c.l.b16 %v797
        %v845 = vunpack.c.h.b16 %v797
        %v846 = vpack.c.b16 %v814, %v814
        %v847 = vpack.c.b16 %v815, %v815
        %v848 = vpack.c.b16 %v816, %v816
        %v849 = vpack.c.b16 %v817, %v817
        %v850 = vpack.c.b16 %v818, %v818
        %v851 = vpack.c.b16 %v819, %v819
        %v852 = vpack.c.b16 %v820, %v820
        %v853 = vpack.c.b16 %v821, %v821
        %v854 = vpack.c.b16 %v822, %v822
        %v855 = vpack.c.b16 %v823, %v823
        %v856 = vpack.c.b16 %v824, %v824
        %v857 = vpack.c.b16 %v825, %v825
        %v858 = vpack.c.b16 %v826, %v826
        %v859 = vpack.c.b16 %v827, %v827
        %v860 = vpack.c.b16 %v828, %v828
        %v861 = vpack.c.b16 %v829, %v829
        %v862 = vpack.c.b16 %v830, %v830
        %v863 = vpack.c.b16 %v831, %v831
        %v864 = vpack.c.b16 %v832, %v832
        %v865 = vpack.c.b16 %v833, %v833
        %v866 = vpack.c.b16 %v834, %v834
        %v867 = vpack.c.b16 %v835, %v835
        %v868 = vpack.c.b16 %v836, %v836
        %v869 = vpack.c.b16 %v837, %v837
        %v870 = vpack.c.b16 %v838, %v838
        %v871 = vpack.c.b16 %v839, %v839
        %v872 = vpack.c.b16 %v840, %v840
        %v873 = vpack.c.b16 %v841, %v841
        %v874 = vpack.c.b16 %v842, %v842
        %v875 = vpack.c.b16 %v843, %v843
        %v876 = vpack.c.b16 %v844, %v844
        %v877 = vpack.c.b16 %v845, %v845
        %vm910 = vcmask 519168
        %911 = vst.msk [vmem:[%s193] sm:$0xf] %vm910, %v846
        %912 = vst.msk [vmem:[%s193 + $0x4] sm:$0xf] %vm910, %v847
        %913 = vst.msk [vmem:[%s193 + $0x8] sm:$0xf] %vm910, %v848
        %914 = vst.msk [vmem:[%s193 + $0xc] sm:$0xf] %vm910, %v849
        %915 = vst.msk [vmem:[%s193 + $0x10] sm:$0xf] %vm910, %v850
        %916 = vst.msk [vmem:[%s193 + $0x14] sm:$0xf] %vm910, %v851
        %917 = vst.msk [vmem:[%s193 + $0x18] sm:$0xf] %vm910, %v852
        %918 = vst.msk [vmem:[%s193 + $0x1c] sm:$0xf] %vm910, %v853
        %919 = vst.msk [vmem:[%s193 + $0x20] sm:$0xf] %vm910, %v854
        %920 = vst.msk [vmem:[%s193 + $0x24] sm:$0xf] %vm910, %v855
        %921 = vst.msk [vmem:[%s193 + $0x28] sm:$0xf] %vm910, %v856
        %922 = vst.msk [vmem:[%s193 + $0x2c] sm:$0xf] %vm910, %v857
        %923 = vst.msk [vmem:[%s193 + $0x30] sm:$0xf] %vm910, %v858
        %924 = vst.msk [vmem:[%s193 + $0x34] sm:$0xf] %vm910, %v859
        %925 = vst.msk [vmem:[%s193 + $0x38] sm:$0xf] %vm910, %v860
        %926 = vst.msk [vmem:[%s193 + $0x3c] sm:$0xf] %vm910, %v861
        %927 = vst.msk [vmem:[%s193 + $0x40] sm:$0xf] %vm910, %v862
        %928 = vst.msk [vmem:[%s193 + $0x44] sm:$0xf] %vm910, %v863
        %929 = vst.msk [vmem:[%s193 + $0x48] sm:$0xf] %vm910, %v864
        %930 = vst.msk [vmem:[%s193 + $0x4c] sm:$0xf] %vm910, %v865
        %931 = vst.msk [vmem:[%s193 + $0x50] sm:$0xf] %vm910, %v866
        %932 = vst.msk [vmem:[%s193 + $0x54] sm:$0xf] %vm910, %v867
        %933 = vst.msk [vmem:[%s193 + $0x58] sm:$0xf] %vm910, %v868
        %934 = vst.msk [vmem:[%s193 + $0x5c] sm:$0xf] %vm910, %v869
        %935 = vst.msk [vmem:[%s193 + $0x60] sm:$0xf] %vm910, %v870
        %936 = vst.msk [vmem:[%s193 + $0x64] sm:$0xf] %vm910, %v871
        %937 = vst.msk [vmem:[%s193 + $0x68] sm:$0xf] %vm910, %v872
        %938 = vst.msk [vmem:[%s193 + $0x6c] sm:$0xf] %vm910, %v873
        %939 = vst.msk [vmem:[%s193 + $0x70] sm:$0xf] %vm910, %v874
        %940 = vst.msk [vmem:[%s193 + $0x74] sm:$0xf] %vm910, %v875
        %941 = vst.msk [vmem:[%s193 + $0x78] sm:$0xf] %vm910, %v876
        %942 = vst.msk [vmem:[%s193 + $0x7c] sm:$0xf] %vm910, %v877
        %s943 = sand.u32 %s115, 1
        %s944 = scalar_lea.sflag [#allocation3], %s943
        %s945 = sand.u32 %s115, 1
        %s946 = smul.addr %s945, 128
        %s947 = scalar_lea.vmem [#allocation2], %s946
        // Predicated region
        $region37: #{_conv2d_impl.1} parent=35 // pred_check
          %p948 = pneg %p125
        $region38: #{_conv2d_impl.1} parent=35 // pred_check_branch
          %950 = sbr.rel (%p948) target = $region40
        $region39: #{_conv2d_impl.1} parent=35 // pred_region
          %s951 = smul.u32 32, %s18
          %s953 = ssub.s32 2048, 2048
          %954 = vsyncadd %s944, %s953
          %s955 = smul.addr %s951, 64
          %s956 = scalar_lea.hbm %s4, %s955
          %s957 = sshll.u32 %s947, 4
          %s958 = int_to_ptr.vmem [resolvable:$true] %s957
          %963 = dma.vmem_to_hbm [thread:$0]  %s958, 2048, %s956, %s944, 64, 64, 4
        $region40: #{_conv2d_impl.1} parent=35 // pred_fallthru
          _
      $region36: #{_conv2d_impl.1} parent=5 // pred_fallthru
        _
      %p964 = scmp.le.s32.totalorder 2, %s13
      // Predicated region
      $region41: #{_conv2d_impl.1} parent=5 // pred_check
        %p965 = pneg %p964
      $region42: #{_conv2d_impl.1} parent=5 // pred_check_branch
        %967 = sbr.rel (%p965) target = $region44
      $region43: #{_conv2d_impl.1} parent=5 // pred_region
        %s968 = ssub.s32 %s13, 2
        // Predicated region
        $region45: #{_conv2d_impl.1} parent=43 // pred_check
          %p969 = pneg %p131
        $region46: #{_conv2d_impl.1} parent=43 // pred_check_branch
          %971 = sbr.rel (%p969) target = $region48
        $region47: #{_conv2d_impl.1} parent=43 // pred_region
          %s972 = sand.u32 %s116, 1
          %s973 = scalar_lea.sflag [#allocation3], %s972
          %s974 = sand.u32 %s116, 1
          %s975 = smul.addr %s974, 128
          %s976 = scalar_lea.vmem [#allocation2], %s975
          %977 = dma.done %s973, 2048
        $region48: #{_conv2d_impl.1} parent=43 // pred_fallthru
          _
      $region44: #{_conv2d_impl.1} parent=5 // pred_fallthru
        _
    $region6: #{_conv2d_impl.1} parent=1 // loop_footer
      %s17 = sadd.s32 1, %s13
    $region7: #{_conv2d_impl.1} parent=1 // loop_footer_branch
      %12 = sbr.rel target = $region3
    $region8: #{_conv2d_impl.1} parent=1 // loop_exit
      _
    %978 = vsyncpa [#allocation3], 1
    %s979 = scalar_lea.sflag [#allocation3], 1
    %980 = vsyncpa %s979, 1

</llo_original>
